<compile_context>
chip_gen: v5e
topology: v5e:2x2
jax: 0.10.0
libtpu: 0.0.40
codegen_flags: <defaults>
</compile_context>

<pallas_src>
import functools

import jax
import jax.numpy as jnp
from jax.experimental import pallas as pl
from jax.experimental.pallas import tpu as pltpu

LANES = 128
DEFAULT_ROW_TILE = 1024  # 1024 x 128 f32 block = 512 KiB; 4x (in+out, 2-buf) = 2 MiB VMEM


def _gaussian_noise_tpu_kernel(seed_ref, x_ref, o_ref, *, sigma):
    # Reseed per tile with (base_seed, tile_id); prng_seed hash-combines its
    # arguments, so per-tile streams are decorrelated (no seed+i arithmetic).
    pltpu.prng_seed(seed_ref[0], pl.program_id(0))
    noise = pltpu.stateful_normal(x_ref.shape, jnp.float32)
    # Arithmetic in f32 (v5e VPU/EUP have no bf16), store back in native dtype.
    o_ref[...] = (x_ref[...].astype(jnp.float32) + noise * sigma).astype(o_ref.dtype)


def _add_precomputed_noise_kernel(x_ref, n_ref, o_ref, *, sigma):
    # Portable fallback (CPU / interpret): noise generated outside the kernel.
    o_ref[...] = (
        x_ref[...].astype(jnp.float32) + n_ref[...].astype(jnp.float32) * sigma
    ).astype(o_ref.dtype)


def gaussian_noise(img, *, sigma, seed=0, row_tile=DEFAULT_ROW_TILE):
    """Returns img + sigma * N(0, 1), same shape/dtype as img (any shape)."""
    orig_shape = img.shape
    orig_dtype = img.dtype
    n = img.size

    flat = jnp.ravel(img)  # keep original dtype end-to-end

    # Lane-dense 2D slab. Fast path: no pad / no slice when n % 128 == 0
    # (true for typical NCHW image tensors). Only ragged sizes pay one
    # pad + slice copy.
    rows = pl.cdiv(n, LANES)
    padded = (rows * LANES) != n
    if padded:
        flat = jnp.pad(flat, (0, rows * LANES - n))
    x2d = flat.reshape(rows, LANES)

    # Block sizing: single full block for small inputs, else large 8-aligned
    # row tiles; a ragged last block (rows % row_tile) is masked by Pallas.
    if rows <= row_tile:
        row_tile = rows  # equals full second-minor dim -> always legal
    else:
        row_tile = max(8, (row_tile // 8) * 8)
    grid = (pl.cdiv(rows, row_tile),)

    if jax.default_backend() == "tpu":
        seed_arr = jnp.asarray([seed], dtype=jnp.int32)
        out2d = pl.pallas_call(
            functools.partial(_gaussian_noise_tpu_kernel, sigma=float(sigma)),
            out_shape=jax.ShapeDtypeStruct((rows, LANES), orig_dtype),
            grid_spec=pltpu.PrefetchScalarGridSpec(
                num_scalar_prefetch=1,
                grid=grid,
                in_specs=[pl.BlockSpec((row_tile, LANES), lambda i, _: (i, 0))],
                out_specs=pl.BlockSpec((row_tile, LANES), lambda i, _: (i, 0)),
            ),
            # Independent per-tile reseeding -> safe to shard across both
            # TensorCores on v7x; harmless on v5e/v6e.
            compiler_params=pltpu.CompilerParams(
                dimension_semantics=("parallel",),
            ),
            # Reuse the input slab's HBM buffer for the output (seed is input 0).
            input_output_aliases={1: 0},
        )(seed_arr, x2d)
        # TODO(synk): if a bundle dump ever shows the single EUP slot binding
        # (Box-Muller transcendentals) at large tiles, switch noise gen to a
        # prng_random_bits uniform-sum approximation (pure VPU).
    else:
        # TODO(synk): non-TPU / interpret fallback — pltpu.prng_seed has no CPU
        # lowering, so draw the noise with jax.random and fuse only the add.
        noise2d = jax.random.normal(
            jax.random.PRNGKey(seed), (rows, LANES), dtype=jnp.float32
        )
        out2d = pl.pallas_call(
            functools.partial(_add_precomputed_noise_kernel, sigma=float(sigma)),
            out_shape=jax.ShapeDtypeStruct((rows, LANES), orig_dtype),
            grid=grid,
            in_specs=[
                pl.BlockSpec((row_tile, LANES), lambda i: (i, 0)),
                pl.BlockSpec((row_tile, LANES), lambda i: (i, 0)),
            ],
            out_specs=pl.BlockSpec((row_tile, LANES), lambda i: (i, 0)),
        )(x2d, noise2d)

    out = out2d.reshape(-1)
    if padded:
        out = out[:n]
    return out.reshape(orig_shape)


if __name__ == "__main__":
    key = jax.random.PRNGKey(0)
    # NCHW input, matching the PyTorch module's typical image usage.
    x = jax.random.normal(key, (2, 4, 16, 16), dtype=jnp.float32)
    sigma = 0.1

    out = gaussian_noise(x, sigma=sigma, seed=42)
    out = jax.block_until_ready(out)

    assert out.shape == x.shape and out.dtype == x.dtype
    diff = out - x
    assert bool(jnp.all(jnp.isfinite(diff)))
    # Added noise should be nonzero with roughly the requested scale.
    std = float(jnp.std(diff))
    assert 0.02 < std < 0.5, f"unexpected noise std {std}"

    print("KERNEL_OK")
</pallas_src>

<mosaic_0001>
module attributes {stable_mosaic.version = 11 : i64} {
  func.func @_add_precomputed_noise_kernel(%arg0: i32, %arg1: memref<16x128xf32, #tpu.memory_space<vmem>>, %arg2: memref<16x128xf32, #tpu.memory_space<vmem>>, %arg3: memref<16x128xf32, #tpu.memory_space<vmem>>) attributes {dimension_semantics = [#tpu.dimension_semantics<arbitrary>], iteration_bounds = array<i64: 1>, scalar_prefetch = 0 : i64, scratch_operands = 0 : i64, tpu.core_type = #tpu.core_type<tc>, window_params = [{transform_indices = @transform_0, window_bounds = array<i64: 16, 128>}, {transform_indices = @transform_1, window_bounds = array<i64: 16, 128>}, {transform_indices = @transform_2, window_bounds = array<i64: 16, 128>}]} {
    %c0 = arith.constant 0 : index
    %c0_0 = arith.constant 0 : index
    %0 = vector.load %arg1[%c0, %c0_0] : memref<16x128xf32, #tpu.memory_space<vmem>>, vector<16x128xf32>
    %c0_1 = arith.constant 0 : index
    %c0_2 = arith.constant 0 : index
    %1 = vector.load %arg2[%c0_1, %c0_2] : memref<16x128xf32, #tpu.memory_space<vmem>>, vector<16x128xf32>
    %cst = arith.constant 1.000000e-01 : f32
    %2 = vector.broadcast %cst : f32 to vector<16x128xf32>
    %3 = arith.mulf %1, %2 : vector<16x128xf32>
    %4 = arith.addf %0, %3 : vector<16x128xf32>
    %c0_3 = arith.constant 0 : index
    %c0_4 = arith.constant 0 : index
    %5 = vector.load %arg3[%c0_3, %c0_4] : memref<16x128xf32, #tpu.memory_space<vmem>>, vector<16x128xf32>
    tpu.vector_store %arg3[%c0_3, %c0_4], %4 {strides = array<i32>} : memref<16x128xf32, #tpu.memory_space<vmem>>, vector<16x128xf32>,
    return
  }
  func.func @transform_0(%arg0: i32) -> (i32, i32) {
    %c0_i32 = arith.constant 0 : i32
    %c0_i32_0 = arith.constant 0 : i32
    return %arg0, %c0_i32 : i32, i32
  }
  func.func @transform_1(%arg0: i32) -> (i32, i32) {
    %c0_i32 = arith.constant 0 : i32
    %c0_i32_0 = arith.constant 0 : i32
    return %arg0, %c0_i32 : i32, i32
  }
  func.func @transform_2(%arg0: i32) -> (i32, i32) {
    %c0_i32 = arith.constant 0 : i32
    %c0_i32_0 = arith.constant 0 : i32
    return %arg0, %c0_i32 : i32, i32
  }
}

</mosaic_0001>

<llo_original>
// kernel: tpu_custom_call.1
$region0: #{tpu_custom_call.1}
  #allocation0 [shape = 'u32[]', space=smem, size = 0x4, offset = 0x4, fixed_abs, tag = 'smem constant byte address 0x4 - core index']
  #allocation1 [shape = 'u32[72,128]{1,0:T(1,128)}', space=vmem, size = 0x9000, scoped, tag = 'internal scratch']
  %s0 = inlined_call_operand.hbm [shape: f32[16,128], index: 0, kind: input, shape index: {}]
  %s1 = inlined_call_operand.hbm [shape: f32[16,128], index: 1, kind: input, shape index: {}]
  %s2 = inlined_call_operand.hbm [shape: f32[16,128], index: 2, kind: output, shape index: {}]
  %s3 = sld [smem:[#allocation0]]
  $region26: #{tpu_custom_call.1} parent=0
    _
  %s5 = ssub.s32 1, %s3
  %s6 = scalar_select 0, %s5, %s3
  $region1: #{tpu_custom_call.1} parent=0
    #allocation2 [shape = 'u8[8192]{0}', space=vmem, size = 0x2000, scoped, tag = 'input window, operand 0, single buffered']
    #allocation3 [shape = 's32[1]{0}', space=sflag, size = 0x4, scoped, tag = 'scoped memory for tpu_custom_call.1']
    #allocation4 [shape = 's32[1]{0}', space=sflag, size = 0x4, scoped, tag = 'scoped memory for tpu_custom_call.1']
    #allocation5 [shape = 'u8[8192]{0}', space=vmem, size = 0x2000, scoped, tag = 'input window, operand 1, single buffered']
    #allocation6 [shape = 's32[1]{0}', space=sflag, size = 0x4, scoped, tag = 'scoped memory for tpu_custom_call.1']
    #allocation7 [shape = 'u8[8192]{0}', space=vmem, size = 0x2000, scoped, tag = 'output window, operand 0, single buffered']
    %7 = vsyncpa [#allocation3], 0
    %8 = vsyncpa [#allocation6], 0
    %9 = vsyncpa [#allocation4], 0
    // Predicated region
    $region2: #{tpu_custom_call.1} parent=1 // pred_check
      _
    $region3: #{tpu_custom_call.1} parent=1 // pred_check_branch
      %11 = sbr.rel (0) target = $region5
    $region4: #{tpu_custom_call.1} parent=1 // pred_region
      %13 = vsyncadd [#allocation3], 0
      %s14 = sshll.u32 %s0, 4
      %s15 = int_to_ptr.hbm [resolvable:$true] %s14
      %s16 = sshll.u32 [#allocation2], 4
      %s17 = int_to_ptr.vmem [resolvable:$true] %s16
      %22 = dma.hbm_to_vmem [thread:$0]  %s15, 256, %s17, [#allocation3], 128, 128, 8
    $region5: #{tpu_custom_call.1} parent=1 // pred_fallthru
      _
    // Predicated region
    $region6: #{tpu_custom_call.1} parent=1 // pred_check
      _
    $region7: #{tpu_custom_call.1} parent=1 // pred_check_branch
      %24 = sbr.rel (0) target = $region9
    $region8: #{tpu_custom_call.1} parent=1 // pred_region
      %26 = vsyncadd [#allocation6], 0
      %s27 = sshll.u32 %s1, 4
      %s28 = int_to_ptr.hbm [resolvable:$true] %s27
      %s29 = sshll.u32 [#allocation5], 4
      %s30 = int_to_ptr.vmem [resolvable:$true] %s29
      %35 = dma.hbm_to_vmem [thread:$0]  %s28, 256, %s30, [#allocation6], 128, 128, 8
    $region9: #{tpu_custom_call.1} parent=1 // pred_fallthru
      _
    // Predicated region
    $region10: #{tpu_custom_call.1} parent=1 // pred_check
      _
    $region11: #{tpu_custom_call.1} parent=1 // pred_check_branch
      %37 = sbr.rel (0) target = $region13
    $region12: #{tpu_custom_call.1} parent=1 // pred_region
      %39 = dma.done [#allocation3], 256
    $region13: #{tpu_custom_call.1} parent=1 // pred_fallthru
      _
    // Predicated region
    $region14: #{tpu_custom_call.1} parent=1 // pred_check
      _
    $region15: #{tpu_custom_call.1} parent=1 // pred_check_branch
      %41 = sbr.rel (0) target = $region17
    $region16: #{tpu_custom_call.1} parent=1 // pred_region
      %43 = dma.done [#allocation6], 256
    $region17: #{tpu_custom_call.1} parent=1 // pred_fallthru
      _
    %v44 = vld [vmem:[#allocation2] sm:$0xff]
    %v45 = vld [vmem:[#allocation2 + $0x8] sm:$0xff]
    %v46 = vld [vmem:[#allocation5] sm:$0xff]
    %v47 = vld [vmem:[#allocation5 + $0x8] sm:$0xff]
    %v48 = vmul.f32 %v46, 0.1
    %v49 = vmul.f32 %v47, 0.1
    %v50 = vadd.f32 %v44, %v48
    %v51 = vadd.f32 %v45, %v49
    %52 = vst [vmem:[#allocation7] sm:$0xff] %v50
    %53 = vst [vmem:[#allocation7 + $0x8] sm:$0xff] %v51
    // Predicated region
    $region18: #{tpu_custom_call.1} parent=1 // pred_check
      _
    $region19: #{tpu_custom_call.1} parent=1 // pred_check_branch
      %55 = sbr.rel (0) target = $region21
    $region20: #{tpu_custom_call.1} parent=1 // pred_region
      %57 = vsyncadd [#allocation4], 0
      %s58 = sshll.u32 [#allocation7], 4
      %s59 = int_to_ptr.vmem [resolvable:$true] %s58
      %s60 = sshll.u32 %s2, 4
      %s61 = int_to_ptr.hbm [resolvable:$true] %s60
      %66 = dma.vmem_to_hbm [thread:$0]  %s59, 256, %s61, [#allocation4], 128, 128, 8
    $region21: #{tpu_custom_call.1} parent=1 // pred_fallthru
      _
    // Predicated region
    $region22: #{tpu_custom_call.1} parent=1 // pred_check
      _
    $region23: #{tpu_custom_call.1} parent=1 // pred_check_branch
      %68 = sbr.rel (0) target = $region25
    $region24: #{tpu_custom_call.1} parent=1 // pred_region
      %70 = dma.done [#allocation4], 256
    $region25: #{tpu_custom_call.1} parent=1 // pred_fallthru
      _
    %71 = vsyncpa [#allocation3], 1
    %72 = vsyncpa [#allocation6], 1
    %73 = vsyncpa [#allocation4], 1

</llo_original>
